<compile_context>
chip_gen: v7x
topology: tpu7x:2x2x1
jax: 0.10.0
libtpu: 0.0.40
codegen_flags: <defaults>
</compile_context>

<pallas_src>
import jax
import jax.numpy as jnp
from jax.experimental import pallas as pl
from jax.experimental.pallas import tpu as pltpu


def _round_up(x, m):
    return ((x + m - 1) // m) * m


def _elu(v):
    # ELU(alpha=1).  exp(min(v,0))-1 keeps the unselected branch finite and
    # lowers cleanly on Mosaic.
    return jnp.where(v > 0.0, v, jnp.exp(jnp.minimum(v, 0.0)) - 1.0)


# ----------------------------------------------------------------------------
# Fused kernel: Linear(Din->6)+ELU, Linear(6->3)+ELU, all operands in VMEM.
# ----------------------------------------------------------------------------
def _features_kernel(x_ref, w1_ref, b1_ref, w2_ref, b2_ref, o_ref):
    h = jnp.dot(x_ref[...], w1_ref[...], preferred_element_type=jnp.float32) + b1_ref[...]
    h = _elu(h)
    y = jnp.dot(h, w2_ref[...], preferred_element_type=jnp.float32) + b2_ref[...]
    o_ref[...] = _elu(y).astype(o_ref.dtype)


def model_features_forward(params, input_features):
    B, _ = input_features.shape
    w1, b1, w2, b2 = params["w1"], params["b1"], params["w2"], params["b2"]
    out_dim = w2.shape[1]

    bp = _round_up(max(B, 8), 8)          # sublane-pad the tiny batch once
    x = input_features
    if bp != B:
        x = jnp.pad(x, ((0, bp - B), (0, 0)))

    out = pl.pallas_call(
        _features_kernel,
        out_shape=jax.ShapeDtypeStruct((bp, out_dim), jnp.float32),
        grid=(1,),
        in_specs=[
            pl.BlockSpec(x.shape, lambda i: (0, 0)),    # activations, whole block
            pl.BlockSpec(w1.shape, lambda i: (0, 0)),   # resident weights
            pl.BlockSpec(b1.shape, lambda i: (0, 0)),
            pl.BlockSpec(w2.shape, lambda i: (0, 0)),
            pl.BlockSpec(b2.shape, lambda i: (0, 0)),
        ],
        out_specs=pl.BlockSpec((bp, out_dim), lambda i: (0, 0)),
        compiler_params=pltpu.CompilerParams(dimension_semantics=("arbitrary",)),
    )(x, w1, b1, w2, b2)
    return out[:B]


# ----------------------------------------------------------------------------
# Parameters: PyTorch-style init, converted once to kernel layout.
# ----------------------------------------------------------------------------
def _init_linear_torch(key, fan_in, fan_out):
    k1, k2 = jax.random.split(key)
    s = 1.0 / jnp.sqrt(jnp.float32(fan_in))
    w = jax.random.uniform(k1, (fan_out, fan_in), jnp.float32, -s, s)  # torch (out, in)
    b = jax.random.uniform(k2, (fan_out,), jnp.float32, -s, s)
    return w, b


def init_params(key, in_channels_size):
    out_l1, out_l2 = 6, 3
    k1, k2 = jax.random.split(key)
    w1, b1 = _init_linear_torch(k1, in_channels_size, out_l1)
    w2, b2 = _init_linear_torch(k2, out_l1, out_l2)
    return {
        "w1": w1.T.astype(jnp.float32), "b1": b1.reshape(1, -1).astype(jnp.float32),
        "w2": w2.T.astype(jnp.float32), "b2": b2.reshape(1, -1).astype(jnp.float32),
    }


if __name__ == "__main__":
    key = jax.random.PRNGKey(0)
    k_params, k_x = jax.random.split(key)

    # Shapes implied by the module: features (B, in_channels_size).
    in_channels_size = 9
    out_channels_size = 3      # stored by the module but unused in forward
    B = 2

    params = init_params(k_params, in_channels_size)
    input_features = jax.random.normal(k_x, (B, in_channels_size), dtype=jnp.float32)

    fwd = jax.jit(model_features_forward)
    out = jax.block_until_ready(fwd(params, input_features))

    # Pure-JAX reference for correctness.
    def _ref(p, x):
        h = x @ p["w1"] + p["b1"]
        h = jnp.where(h > 0.0, h, jnp.exp(jnp.minimum(h, 0.0)) - 1.0)
        y = h @ p["w2"] + p["b2"]
        return jnp.where(y > 0.0, y, jnp.exp(jnp.minimum(y, 0.0)) - 1.0)

    expected = _ref(params, input_features)

    assert out.shape == (B, 3)
    assert bool(jnp.all(jnp.isfinite(out)))
    assert bool(jnp.allclose(out, expected, atol=2e-2, rtol=2e-2))
    print("KERNEL_OK")
</pallas_src>

<mosaic_0001>
module attributes {stable_mosaic.version = 11 : i64} {
  func.func @_features_kernel(%arg0: i32, %arg1: memref<8x9xf32, #tpu.memory_space<vmem>>, %arg2: memref<9x6xf32, #tpu.memory_space<vmem>>, %arg3: memref<1x6xf32, #tpu.memory_space<vmem>>, %arg4: memref<6x3xf32, #tpu.memory_space<vmem>>, %arg5: memref<1x3xf32, #tpu.memory_space<vmem>>, %arg6: memref<8x3xf32, #tpu.memory_space<vmem>>) attributes {dimension_semantics = [#tpu.dimension_semantics<arbitrary>], iteration_bounds = array<i64: 1>, scalar_prefetch = 0 : i64, scratch_operands = 0 : i64, tpu.core_type = #tpu.core_type<tc>, window_params = [{pipeline_mode = #tpu.pipeline_mode<synchronous>, transform_indices = @transform_0, window_bounds = array<i64: 8, 9>}, {pipeline_mode = #tpu.pipeline_mode<synchronous>, transform_indices = @transform_1, window_bounds = array<i64: 9, 6>}, {pipeline_mode = #tpu.pipeline_mode<synchronous>, transform_indices = @transform_2, window_bounds = array<i64: 1, 6>}, {pipeline_mode = #tpu.pipeline_mode<synchronous>, transform_indices = @transform_3, window_bounds = array<i64: 6, 3>}, {pipeline_mode = #tpu.pipeline_mode<synchronous>, transform_indices = @transform_4, window_bounds = array<i64: 1, 3>}, {pipeline_mode = #tpu.pipeline_mode<synchronous>, transform_indices = @transform_5, window_bounds = array<i64: 8, 3>}]} {
    %c0 = arith.constant 0 : index
    %c0_0 = arith.constant 0 : index
    %0 = vector.load %arg1[%c0, %c0_0] : memref<8x9xf32, #tpu.memory_space<vmem>>, vector<8x9xf32>
    %c0_1 = arith.constant 0 : index
    %c0_2 = arith.constant 0 : index
    %1 = vector.load %arg2[%c0_1, %c0_2] : memref<9x6xf32, #tpu.memory_space<vmem>>, vector<9x6xf32>
    %cst = arith.constant dense<0.000000e+00> : vector<8x6xf32>
    %2 = tpu.matmul %0, %1, %cst {dimension_numbers = #tpu.dot_dimension_numbers<[1], [0], [0], [1], [0, 0, 1, 1], [], []>} : vector<8x9xf32>, vector<9x6xf32>, vector<8x6xf32> -> vector<8x6xf32>
    %c0_3 = arith.constant 0 : index
    %c0_4 = arith.constant 0 : index
    %3 = vector.load %arg3[%c0_3, %c0_4] : memref<1x6xf32, #tpu.memory_space<vmem>>, vector<1x6xf32>
    %4 = vector.broadcast %3 : vector<1x6xf32> to vector<8x6xf32>
    %5 = arith.addf %2, %4 : vector<8x6xf32>
    %cst_5 = arith.constant 0.000000e+00 : f32
    %6 = vector.broadcast %cst_5 : f32 to vector<8x6xf32>
    %7 = arith.cmpf ogt, %5, %6 : vector<8x6xf32>
    %cst_6 = arith.constant 0.000000e+00 : f32
    %8 = vector.broadcast %cst_6 : f32 to vector<8x6xf32>
    %9 = arith.minimumf %5, %8 : vector<8x6xf32>
    %10 = math.exp %9 : vector<8x6xf32>
    %cst_7 = arith.constant 1.000000e+00 : f32
    %11 = vector.broadcast %cst_7 : f32 to vector<8x6xf32>
    %12 = arith.subf %10, %11 : vector<8x6xf32>
    %13 = arith.select %7, %5, %12 : vector<8x6xi1>, vector<8x6xf32>
    %c0_8 = arith.constant 0 : index
    %c0_9 = arith.constant 0 : index
    %14 = vector.load %arg4[%c0_8, %c0_9] : memref<6x3xf32, #tpu.memory_space<vmem>>, vector<6x3xf32>
    %cst_10 = arith.constant dense<0.000000e+00> : vector<8x3xf32>
    %15 = tpu.matmul %13, %14, %cst_10 {dimension_numbers = #tpu.dot_dimension_numbers<[1], [0], [0], [1], [0, 0, 1, 1], [], []>} : vector<8x6xf32>, vector<6x3xf32>, vector<8x3xf32> -> vector<8x3xf32>
    %c0_11 = arith.constant 0 : index
    %c0_12 = arith.constant 0 : index
    %16 = vector.load %arg5[%c0_11, %c0_12] : memref<1x3xf32, #tpu.memory_space<vmem>>, vector<1x3xf32>
    %17 = vector.broadcast %16 : vector<1x3xf32> to vector<8x3xf32>
    %18 = arith.addf %15, %17 : vector<8x3xf32>
    %cst_13 = arith.constant 0.000000e+00 : f32
    %19 = vector.broadcast %cst_13 : f32 to vector<8x3xf32>
    %20 = arith.cmpf ogt, %18, %19 : vector<8x3xf32>
    %cst_14 = arith.constant 0.000000e+00 : f32
    %21 = vector.broadcast %cst_14 : f32 to vector<8x3xf32>
    %22 = arith.minimumf %18, %21 : vector<8x3xf32>
    %23 = math.exp %22 : vector<8x3xf32>
    %cst_15 = arith.constant 1.000000e+00 : f32
    %24 = vector.broadcast %cst_15 : f32 to vector<8x3xf32>
    %25 = arith.subf %23, %24 : vector<8x3xf32>
    %26 = arith.select %20, %18, %25 : vector<8x3xi1>, vector<8x3xf32>
    %c0_16 = arith.constant 0 : index
    %c0_17 = arith.constant 0 : index
    %27 = vector.load %arg6[%c0_16, %c0_17] : memref<8x3xf32, #tpu.memory_space<vmem>>, vector<8x3xf32>
    tpu.vector_store %arg6[%c0_16, %c0_17], %26 {strides = array<i32>} : memref<8x3xf32, #tpu.memory_space<vmem>>, vector<8x3xf32>,
    return
  }
  func.func @transform_0(%arg0: i32) -> (i32, i32) {
    %c0_i32 = arith.constant 0 : i32
    %c0_i32_0 = arith.constant 0 : i32
    %c0_i32_1 = arith.constant 0 : i32
    return %c0_i32, %c0_i32_0 : i32, i32
  }
  func.func @transform_1(%arg0: i32) -> (i32, i32) {
    %c0_i32 = arith.constant 0 : i32
    %c0_i32_0 = arith.constant 0 : i32
    %c0_i32_1 = arith.constant 0 : i32
    return %c0_i32, %c0_i32_0 : i32, i32
  }
  func.func @transform_2(%arg0: i32) -> (i32, i32) {
    %c0_i32 = arith.constant 0 : i32
    %c0_i32_0 = arith.constant 0 : i32
    %c0_i32_1 = arith.constant 0 : i32
    return %c0_i32, %c0_i32_0 : i32, i32
  }
  func.func @transform_3(%arg0: i32) -> (i32, i32) {
    %c0_i32 = arith.constant 0 : i32
    %c0_i32_0 = arith.constant 0 : i32
    %c0_i32_1 = arith.constant 0 : i32
    return %c0_i32, %c0_i32_0 : i32, i32
  }
  func.func @transform_4(%arg0: i32) -> (i32, i32) {
    %c0_i32 = arith.constant 0 : i32
    %c0_i32_0 = arith.constant 0 : i32
    %c0_i32_1 = arith.constant 0 : i32
    return %c0_i32, %c0_i32_0 : i32, i32
  }
  func.func @transform_5(%arg0: i32) -> (i32, i32) {
    %c0_i32 = arith.constant 0 : i32
    %c0_i32_0 = arith.constant 0 : i32
    %c0_i32_1 = arith.constant 0 : i32
    return %c0_i32, %c0_i32_0 : i32, i32
  }
}

</mosaic_0001>

<llo_original>
// kernel: model_features_forward.1
$region0: #{model_features_forward.1}
  #allocation0 [shape = 'u32[]', space=smem, size = 0x4, offset = 0x4, fixed_abs, tag = 'smem constant byte address 0x4 - core index']
  #allocation1 [shape = 'u32[144,128]{1,0:T(1,128)}', space=vmem, size = 0x12000, scoped, tag = 'internal scratch']
  %s0 = inlined_call_operand.vmem [shape: f32[8,9], index: 0, kind: input, shape index: {}]
  %s1 = inlined_call_operand.vmem [shape: f32[9,6], index: 1, kind: input, shape index: {}]
  %s2 = inlined_call_operand.vmem [shape: f32[1,6], index: 2, kind: input, shape index: {}]
  %s3 = inlined_call_operand.vmem [shape: f32[6,3], index: 3, kind: input, shape index: {}]
  %s4 = inlined_call_operand.vmem [shape: f32[1,3], index: 4, kind: input, shape index: {}]
  %s5 = inlined_call_operand.vmem [shape: f32[8,3], index: 5, kind: output, shape index: {}]
  %s6 = sld [smem:[#allocation0]]
  $region30: #{model_features_forward.1} parent=0
    _
  %s8 = ssub.s32 1, %s6
  %s9 = scalar_select 0, %s8, %s6
  // Predicated region
  $region2: #{model_features_forward.1} parent=0 // pred_check
    _
  $region3: #{model_features_forward.1} parent=0 // pred_check_branch
    %11 = sbr.rel (0) target = $region5
  $region4: #{model_features_forward.1} parent=0 // pred_region
    _
  $region5: #{model_features_forward.1} parent=0 // pred_fallthru
    _
  // Predicated region
  $region6: #{model_features_forward.1} parent=0 // pred_check
    _
  $region7: #{model_features_forward.1} parent=0 // pred_check_branch
    %13 = sbr.rel (0) target = $region9
  $region8: #{model_features_forward.1} parent=0 // pred_region
    _
  $region9: #{model_features_forward.1} parent=0 // pred_fallthru
    _
  // Predicated region
  $region10: #{model_features_forward.1} parent=0 // pred_check
    _
  $region11: #{model_features_forward.1} parent=0 // pred_check_branch
    %15 = sbr.rel (0) target = $region13
  $region12: #{model_features_forward.1} parent=0 // pred_region
    _
  $region13: #{model_features_forward.1} parent=0 // pred_fallthru
    _
  // Predicated region
  $region14: #{model_features_forward.1} parent=0 // pred_check
    _
  $region15: #{model_features_forward.1} parent=0 // pred_check_branch
    %17 = sbr.rel (0) target = $region17
  $region16: #{model_features_forward.1} parent=0 // pred_region
    _
  $region17: #{model_features_forward.1} parent=0 // pred_fallthru
    _
  // Predicated region
  $region18: #{model_features_forward.1} parent=0 // pred_check
    _
  $region19: #{model_features_forward.1} parent=0 // pred_check_branch
    %19 = sbr.rel (0) target = $region21
  $region20: #{model_features_forward.1} parent=0 // pred_region
    _
  $region21: #{model_features_forward.1} parent=0 // pred_fallthru
    _
  %v20 = vld [vmem:[%s0] sm:$0xff]
  %v21 = vld [vmem:[%s1] sm:$0xff]
  %v22 = vld [vmem:[%s1 + $0x8] sm:$0x1]
  %v23 = vld [vmem:[%s2] sm:$0x1]
  %v25 = vlaneseq
  %v26 = vshrl.u32 %v25, 7
  %v27 = vsub.s32 0, %v26
  %v28 = vrot.slane %v23, %v27
  %vm30 = vcmask 72704
  %v32 = vsel %vm30, %v20, 0
  %vm34 = vcmask 1040384
  %v36 = vsel %vm34, %v22, 0
  %38 = vmatprep.subr.mxu0 0.0
  %39 = vmatpush1.msra.mxu0 %v21
  %40 = vmatprep.subr.mxu0 0.0
  %41 = vmatpush1.msra.mxu0 %v36
  %42 = vmatprep.subr.mxu0 0.0
  %43 = vmatpush1.msra.mxu0 0.0
  %44 = vmatprep.subr.mxu0 0.0
  %45 = vmatpush1.msra.mxu0 0.0
  %46 = vmatprep.subr.mxu0 0.0
  %47 = vmatpush1.msra.mxu0 0.0
  %48 = vmatprep.subr.mxu0 0.0
  %49 = vmatpush1.msra.mxu0 0.0
  %50 = vmatprep.subr.mxu0 0.0
  %51 = vmatpush1.msra.mxu0 0.0
  %52 = vmatprep.subr.mxu0 0.0
  %53 = vmatpush1.msra.mxu0 0.0
  %54 = vmatprep.subr.mxu0 0.0
  %55 = vmatpush1.msra.mxu0 0.0
  %56 = vmatprep.subr.mxu0 0.0
  %57 = vmatpush1.msra.mxu0 0.0
  %58 = vmatprep.subr.mxu0 0.0
  %59 = vmatpush1.msra.mxu0 0.0
  %60 = vmatprep.subr.mxu0 0.0
  %61 = vmatpush1.msra.mxu0 0.0
  %62 = vmatprep.subr.mxu0 0.0
  %63 = vmatpush1.msra.mxu0 0.0
  %64 = vmatprep.subr.mxu0 0.0
  %65 = vmatpush1.msra.mxu0 0.0
  %66 = vmatprep.subr.mxu0 0.0
  %67 = vmatpush1.msra.mxu0 0.0
  %68 = vmatprep.subr.mxu0 0.0
  %69 = vmatpush1.msra.mxu0 0.0
  %70 = vmatprep.subr.mxu0 0.0
  %71 = vmatpush1.msra.mxu0 0.0
  %72 = vmatprep.subr.mxu0 0.0
  %73 = vmatpush1.msra.mxu0 0.0
  %74 = vmatprep.subr.mxu0 0.0
  %75 = vmatpush1.msra.mxu0 0.0
  %76 = vmatprep.subr.mxu0 0.0
  %77 = vmatpush1.msra.mxu0 0.0
  %78 = vmatprep.subr.mxu0 0.0
  %79 = vmatpush1.msra.mxu0 0.0
  %80 = vmatprep.subr.mxu0 0.0
  %81 = vmatpush1.msra.mxu0 0.0
  %82 = vmatprep.subr.mxu0 0.0
  %83 = vmatpush1.msra.mxu0 0.0
  %84 = vmatprep.subr.mxu0 0.0
  %85 = vmatpush1.msra.mxu0 0.0
  %86 = vmatprep.subr.mxu0 0.0
  %87 = vmatpush1.msra.mxu0 0.0
  %88 = vmatprep.subr.mxu0 0.0
  %89 = vmatpush1.msra.mxu0 0.0
  %90 = vmatprep.subr.mxu0 0.0
  %91 = vmatpush1.msra.mxu0 0.0
  %92 = vmatprep.subr.mxu0 0.0
  %93 = vmatpush1.msra.mxu0 0.0
  %94 = vmatprep.subr.mxu0 0.0
  %95 = vmatpush1.msra.mxu0 0.0
  %96 = vmatprep.subr.mxu0 0.0
  %97 = vmatpush1.msra.mxu0 0.0
  %98 = vmatprep.subr.mxu0 0.0
  %99 = vmatpush1.msra.mxu0 0.0
  %100 = vmatprep.subr.mxu0 0.0
  %101 = vmatpush1.msra.mxu0 0.0
  %102 = vmatprep.mubr.f32.mxu0 0.0
  %103 = vmatmul.mubr.f32.gmra.mrb[0].mxu0 %v32
  %v104 = vpop.f32.mrb[0].mxu0
  %v105 = vadd.f32 %v28, %v104
  %v106 = vpop.f32.mrb[0].mxu0
  %107 = vdwg.mxu0
  %vm108 = vcmp.gt.f32.partialorder %v105, 0.0
  %v109 = vmin.f32 %v105, 0.0
  %v110 = vmul.f32 %v109, 1.442695
  %v111 = vpow.pop %v110
  %v112 = vsub.f32 %v111, 1.0
  %v113 = vsel %vm108, %v105, %v112
  %v114 = vld [vmem:[%s3] sm:$0x3f]
  %v115 = vld [vmem:[%s4] sm:$0x1]
  %v117 = vlaneseq
  %v118 = vshrl.u32 %v117, 7
  %v119 = vsub.s32 0, %v118
  %v120 = vrot.slane %v115, %v119
  %vm122 = vcmask 48128
  %v124 = vsel %vm122, %v113, 0
  %vm126 = vcmask 1045504
  %v128 = vsel %vm126, %v114, 0
  %130 = vmatprep.subr.mxu0 0.0
  %131 = vmatpush1.msra.mxu0 %v128
  %132 = vmatprep.subr.mxu0 0.0
  %133 = vmatpush1.msra.mxu0 0.0
  %134 = vmatprep.subr.mxu0 0.0
  %135 = vmatpush1.msra.mxu0 0.0
  %136 = vmatprep.subr.mxu0 0.0
  %137 = vmatpush1.msra.mxu0 0.0
  %138 = vmatprep.subr.mxu0 0.0
  %139 = vmatpush1.msra.mxu0 0.0
  %140 = vmatprep.subr.mxu0 0.0
  %141 = vmatpush1.msra.mxu0 0.0
  %142 = vmatprep.subr.mxu0 0.0
  %143 = vmatpush1.msra.mxu0 0.0
  %144 = vmatprep.subr.mxu0 0.0
  %145 = vmatpush1.msra.mxu0 0.0
  %146 = vmatprep.subr.mxu0 0.0
  %147 = vmatpush1.msra.mxu0 0.0
  %148 = vmatprep.subr.mxu0 0.0
  %149 = vmatpush1.msra.mxu0 0.0
  %150 = vmatprep.subr.mxu0 0.0
  %151 = vmatpush1.msra.mxu0 0.0
  %152 = vmatprep.subr.mxu0 0.0
  %153 = vmatpush1.msra.mxu0 0.0
  %154 = vmatprep.subr.mxu0 0.0
  %155 = vmatpush1.msra.mxu0 0.0
  %156 = vmatprep.subr.mxu0 0.0
  %157 = vmatpush1.msra.mxu0 0.0
  %158 = vmatprep.subr.mxu0 0.0
  %159 = vmatpush1.msra.mxu0 0.0
  %160 = vmatprep.subr.mxu0 0.0
  %161 = vmatpush1.msra.mxu0 0.0
  %162 = vmatprep.subr.mxu0 0.0
  %163 = vmatpush1.msra.mxu0 0.0
  %164 = vmatprep.subr.mxu0 0.0
  %165 = vmatpush1.msra.mxu0 0.0
  %166 = vmatprep.subr.mxu0 0.0
  %167 = vmatpush1.msra.mxu0 0.0
  %168 = vmatprep.subr.mxu0 0.0
  %169 = vmatpush1.msra.mxu0 0.0
  %170 = vmatprep.subr.mxu0 0.0
  %171 = vmatpush1.msra.mxu0 0.0
  %172 = vmatprep.subr.mxu0 0.0
  %173 = vmatpush1.msra.mxu0 0.0
  %174 = vmatprep.subr.mxu0 0.0
  %175 = vmatpush1.msra.mxu0 0.0
  %176 = vmatprep.subr.mxu0 0.0
  %177 = vmatpush1.msra.mxu0 0.0
  %178 = vmatprep.subr.mxu0 0.0
  %179 = vmatpush1.msra.mxu0 0.0
  %180 = vmatprep.subr.mxu0 0.0
  %181 = vmatpush1.msra.mxu0 0.0
  %182 = vmatprep.subr.mxu0 0.0
  %183 = vmatpush1.msra.mxu0 0.0
  %184 = vmatprep.subr.mxu0 0.0
  %185 = vmatpush1.msra.mxu0 0.0
  %186 = vmatprep.subr.mxu0 0.0
  %187 = vmatpush1.msra.mxu0 0.0
  %188 = vmatprep.subr.mxu0 0.0
  %189 = vmatpush1.msra.mxu0 0.0
  %190 = vmatprep.subr.mxu0 0.0
  %191 = vmatpush1.msra.mxu0 0.0
  %192 = vmatprep.subr.mxu0 0.0
  %193 = vmatpush1.msra.mxu0 0.0
  %194 = vmatprep.mubr.f32.mxu0 0.0
  %195 = vmatmul.mubr.f32.gmra.mrb[0].mxu0 %v124
  %v196 = vpop.f32.mrb[0].mxu0
  %v197 = vadd.f32 %v120, %v196
  %v198 = vpop.f32.mrb[0].mxu0
  %199 = vdwg.mxu0
  %vm200 = vcmp.gt.f32.partialorder %v197, 0.0
  %v201 = vmin.f32 %v197, 0.0
  %v202 = vmul.f32 %v201, 1.442695
  %v203 = vpow.pop %v202
  %v204 = vsub.f32 %v203, 1.0
  %v205 = vsel %vm200, %v197, %v204
  %vm206 = vcmask 23552
  %207 = vst.msk [vmem:[%s5] sm:$0xff] %vm206, %v205
  // Predicated region
  $region22: #{model_features_forward.1} parent=0 // pred_check
    _
  $region23: #{model_features_forward.1} parent=0 // pred_check_branch
    %209 = sbr.rel (0) target = $region25
  $region24: #{model_features_forward.1} parent=0 // pred_region
    _
  $region25: #{model_features_forward.1} parent=0 // pred_fallthru
    _
  // Predicated region
  $region26: #{model_features_forward.1} parent=0 // pred_check
    _
  $region27: #{model_features_forward.1} parent=0 // pred_check_branch
    %211 = sbr.rel (0) target = $region29
  $region28: #{model_features_forward.1} parent=0 // pred_region
    _
  $region29: #{model_features_forward.1} parent=0 // pred_fallthru
    _

</llo_original>
